<compile_context>
chip_gen: v6e
topology: v6e:2x2x1
jax: 0.10.0
libtpu: 0.0.40
codegen_flags: <defaults>
</compile_context>

<pallas_src>
import functools

import jax
import jax.numpy as jnp
import numpy as np
from jax.experimental import pallas as pl
from jax.experimental.pallas import tpu as pltpu


# ---------------------------------------------------------------------------
# Twiddle factors: built once per (L, D, dtype), bounded cache, passed as
# jit operands (not embedded constants). Angles use integer (i*j) mod N before
# scaling by 2*pi/N so they remain exact for large L / D.
# ---------------------------------------------------------------------------
@functools.lru_cache(maxsize=8)
def _dft_twiddles(L, D, dtype_name):
    dt = jnp.dtype(dtype_name)
    dd = np.arange(D, dtype=np.int64)
    ll = np.arange(L, dtype=np.int64)
    ang_d = (2.0 * np.pi / D) * ((dd[:, None] * dd[None, :]) % D)
    ang_l = (2.0 * np.pi / L) * ((ll[:, None] * ll[None, :]) % L)
    w_d = np.concatenate([np.cos(ang_d), np.sin(ang_d)], axis=1)    # (D, 2D) = [CosD |  SinD]
    w_l = np.concatenate([np.cos(ang_l), -np.sin(ang_l)], axis=1)   # (L, 2L) = [CosL | -SinL]
    return jnp.asarray(w_d, dtype=dt), jnp.asarray(w_l, dtype=dt)


@functools.lru_cache(maxsize=1)
def _tpu_config():
    """(two_tensorcores, usable VMEM budget in bytes) for the local TPU generation."""
    kind = ""
    try:
        kind = jax.devices()[0].device_kind.lower()
    except Exception:
        pass
    if "v7" in kind:
        return True, 48 * 1024 * 1024      # 2 TCs/chip, 64 MiB physical VMEM -> headroom
    if "v5" in kind or "v6" in kind:
        return False, 96 * 1024 * 1024     # 1 TC, 128 MiB physical VMEM
    return False, 64 * 1024 * 1024         # conservative default (v4 etc.)


def _pick_block_b(B, L, D, compute_dtype, vmem_budget, two_cores):
    """Largest batch tile that (a) fits the VMEM budget, (b) divides B, and (c) leaves
    >= 2 grid steps on dual-TensorCore chips so the 'parallel' batch axis shards."""
    cs = jnp.dtype(compute_dtype).itemsize
    # Per-batch-element VMEM: double-buffered f32 x/out blocks plus live stage-1/2
    # intermediates (f32 ab + compute-dtype re/im/stacked + f32 out_t).
    per_b = L * D * (32 + 6 * cs)
    fixed = (2 * D * D + 2 * L * L) * cs            # single-buffered resident twiddles
    avail = max(vmem_budget - fixed, per_b)
    cap = int(min(B, avail // per_b, max(1, 512 // L)))   # bt*L <= 512 bounds the unroll
    cap = max(cap, 1)
    if two_cores and B >= 2:
        cap = min(cap, max(1, B // 2))              # keep >= 2 grid steps for 2 TCs
    best = 1
    for cand in range(1, cap + 1):
        if B % cand == 0:
            best = cand
    return best


def _const_spec(shape):
    """BlockSpec for an operand whose block index never changes across the grid:
    single-buffer it so it does not waste a second VMEM copy."""
    index_map = lambda i: (0,) * len(shape)
    try:
        return pl.BlockSpec(shape, index_map, pipeline_mode=pl.Buffered(1))
    except TypeError:   # older jax without pipeline_mode: fall back to default buffering
        return pl.BlockSpec(shape, index_map)


def _make_fourier_kernel(compute_dtype, lane_aligned):
    compute_dtype = jnp.dtype(compute_dtype)

    def kernel(x_ref, wd_ref, wl_ref, o_ref):
        bt, L, D = x_ref.shape

        x2 = x_ref[...].reshape(bt * L, D)          # MXU M dim = bt*L (leading-dim merge)
        if x2.dtype != compute_dtype:
            x2 = x2.astype(compute_dtype)           # in-kernel cast, hidden under MXU work

        # ---- Stage 1: hidden-dim DFT with fused [CosD | SinD] twiddle ---------------
        if lane_aligned:
            ab = jnp.dot(x2, wd_ref[...], preferred_element_type=jnp.float32)  # (bt*L, 2D)
            re_d, im_d = ab[:, :D], ab[:, D:]       # lane-aligned split (D % 128 == 0)
        else:
            # Unaligned D: two matmuls against small weight slices so the large
            # intermediate is never split on a non-128 lane boundary.
            re_d = jnp.dot(x2, wd_ref[:, :D], preferred_element_type=jnp.float32)
            im_d = jnp.dot(x2, wd_ref[:, D:], preferred_element_type=jnp.float32)
        if compute_dtype != jnp.float32:
            re_d = re_d.astype(compute_dtype)
            im_d = im_d.astype(compute_dtype)

        # ---- Stage 2: seq-dim DFT, one wide matmul with fused [CosL | -SinL] --------
        # Fold the batch tile into the matmul N dim: (bt*L, D) -> (L, bt*D) by placing
        # each batch element's (L, D) block side by side along the lane axis.
        # (Static row slices + lane concat; no (bt,L,L) broadcast, no batched einsum.)
        re_t = jnp.concatenate([re_d[b * L:(b + 1) * L, :] for b in range(bt)], axis=1)
        im_t = jnp.concatenate([im_d[b * L:(b + 1) * L, :] for b in range(bt)], axis=1)
        stacked = jnp.concatenate([re_t, im_t], axis=0)                     # (2L, bt*D)
        out_t = jnp.dot(wl_ref[...], stacked,
                        preferred_element_type=jnp.float32)                # (L, bt*D)

        # Un-fold the batch from the lane axis back to the leading output axis.
        for b in range(bt):
            o_ref[b] = out_t[:, b * D:(b + 1) * D]

    return kernel


@functools.partial(jax.jit, static_argnames=("block_b", "compute_dtype", "vmem_limit_bytes"))
def _fourier_pallas(x, w_d, w_l, *, block_b, compute_dtype, vmem_limit_bytes):
    B, L, D = x.shape
    lane_aligned = (D % 128 == 0)
    grid_spec = pltpu.PrefetchScalarGridSpec(
        num_scalar_prefetch=0,
        grid=(B // block_b,),
        in_specs=[
            pl.BlockSpec((block_b, L, D), lambda i: (i, 0, 0)),   # batch tile of x
            _const_spec((D, 2 * D)),                              # W_D = [CosD |  SinD]
            _const_spec((L, 2 * L)),                              # W_L = [CosL | -SinL]
        ],
        out_specs=pl.BlockSpec((block_b, L, D), lambda i: (i, 0, 0)),
    )
    return pl.pallas_call(
        _make_fourier_kernel(compute_dtype, lane_aligned),
        out_shape=jax.ShapeDtypeStruct((B, L, D), jnp.float32),
        grid_spec=grid_spec,
        compiler_params=pltpu.CompilerParams(
            dimension_semantics=("parallel",),        # batch tiles are independent
            vmem_limit_bytes=vmem_limit_bytes,
        ),
    )(x, w_d, w_l)


def fourier_layer(x, block_b=None, compute_dtype=jnp.float32):
    """Re(fft(fft(x, axis=2), axis=1)) for x of shape (B, L, D) via a Pallas TPU kernel.

    compute_dtype=jnp.bfloat16 runs both MXU stages in bf16 (recommended for throughput on
    v6e/v7x when the accuracy budget allows -- note the cancelling CosL@re - SinL@im
    combination amplifies bf16 rounding); f32 accumulation is always kept.
    """
    B, L, D = x.shape
    compute_dtype = jnp.dtype(compute_dtype)
    two_cores, vmem_budget = _tpu_config()
    if block_b is None:
        block_b = _pick_block_b(B, L, D, compute_dtype, vmem_budget, two_cores)
    if B % block_b != 0:
        raise ValueError(f"block_b={block_b} must divide batch size {B}")
    w_d, w_l = _dft_twiddles(L, D, compute_dtype.name)
    return _fourier_pallas(x, w_d, w_l, block_b=block_b,
                           compute_dtype=compute_dtype,
                           vmem_limit_bytes=vmem_budget)


if __name__ == "__main__":
    root_key = jax.random.PRNGKey(0)
    k1, k2 = jax.random.split(root_key)

    def reference(x):
        return jnp.real(jnp.fft.fft(jnp.fft.fft(x, axis=2), axis=1)).astype(jnp.float32)

    # Main config: hidden dim = 128 (TPU lane width) -> lane-dense loads/stores and an
    # aligned cos|sin split of the stage-1 result.
    B, L, D = 8, 8, 128
    x = jax.random.normal(k1, (B, L, D), dtype=jnp.float32)
    out = jax.block_until_ready(fourier_layer(x))
    ref = reference(x)
    np.testing.assert_allclose(np.asarray(out), np.asarray(ref), rtol=1e-3, atol=1e-2)

    # Small/odd config from the module example: exercises the non-128-aligned path.
    B2, L2, D2 = 2, 8, 32
    x2 = jax.random.normal(k2, (B2, L2, D2), dtype=jnp.float32)
    out2 = jax.block_until_ready(fourier_layer(x2))
    ref2 = reference(x2)
    np.testing.assert_allclose(np.asarray(out2), np.asarray(ref2), rtol=1e-3, atol=5e-3)

    # bf16 compute path (the v6e/v7x MXU-throughput option); looser tolerance.
    out_bf16 = jax.block_until_ready(fourier_layer(x, compute_dtype=jnp.bfloat16))
    np.testing.assert_allclose(np.asarray(out_bf16), np.asarray(ref), rtol=5e-2, atol=2.0)

    print("KERNEL_OK")
</pallas_src>

<mosaic_0001>
module attributes {stable_mosaic.version = 11 : i64} {
  func.func @kernel(%arg0: i32, %arg1: memref<8x8x128xf32, #tpu.memory_space<vmem>>, %arg2: memref<128x256xf32, #tpu.memory_space<vmem>>, %arg3: memref<8x16xf32, #tpu.memory_space<vmem>>, %arg4: memref<8x8x128xf32, #tpu.memory_space<vmem>>) attributes {dimension_semantics = [#tpu.dimension_semantics<parallel>], iteration_bounds = array<i64: 1>, scalar_prefetch = 0 : i64, scratch_operands = 0 : i64, tpu.core_type = #tpu.core_type<tc>, window_params = [{transform_indices = @transform_0, window_bounds = array<i64: 8, 8, 128>}, {pipeline_mode = #tpu.pipeline_mode<synchronous>, transform_indices = @transform_1, window_bounds = array<i64: 128, 256>}, {pipeline_mode = #tpu.pipeline_mode<synchronous>, transform_indices = @transform_2, window_bounds = array<i64: 8, 16>}, {transform_indices = @transform_3, window_bounds = array<i64: 8, 8, 128>}]} {
    %c0 = arith.constant 0 : index
    %c0_0 = arith.constant 0 : index
    %c0_1 = arith.constant 0 : index
    %0 = vector.load %arg1[%c0, %c0_0, %c0_1] : memref<8x8x128xf32, #tpu.memory_space<vmem>>, vector<8x8x128xf32>
    %1 = vector.shape_cast %0 : vector<8x8x128xf32> to vector<64x128xf32>
    %c0_2 = arith.constant 0 : index
    %c0_3 = arith.constant 0 : index
    %2 = vector.load %arg2[%c0_2, %c0_3] : memref<128x256xf32, #tpu.memory_space<vmem>>, vector<128x256xf32>
    %cst = arith.constant dense<0.000000e+00> : vector<64x256xf32>
    %3 = tpu.matmul %1, %2, %cst {dimension_numbers = #tpu.dot_dimension_numbers<[1], [0], [0], [1], [0, 0, 1, 1], [], []>} : vector<64x128xf32>, vector<128x256xf32>, vector<64x256xf32> -> vector<64x256xf32>
    %4 = vector.extract_strided_slice %3 {offsets = [0, 0], sizes = [64, 128], strides = [1, 1]} : vector<64x256xf32> to vector<64x128xf32>
    %5 = vector.extract_strided_slice %3 {offsets = [0, 128], sizes = [64, 128], strides = [1, 1]} : vector<64x256xf32> to vector<64x128xf32>
    %6 = vector.extract_strided_slice %4 {offsets = [0, 0], sizes = [8, 128], strides = [1, 1]} : vector<64x128xf32> to vector<8x128xf32>
    %7 = vector.extract_strided_slice %4 {offsets = [8, 0], sizes = [8, 128], strides = [1, 1]} : vector<64x128xf32> to vector<8x128xf32>
    %8 = vector.extract_strided_slice %4 {offsets = [16, 0], sizes = [8, 128], strides = [1, 1]} : vector<64x128xf32> to vector<8x128xf32>
    %9 = vector.extract_strided_slice %4 {offsets = [24, 0], sizes = [8, 128], strides = [1, 1]} : vector<64x128xf32> to vector<8x128xf32>
    %10 = vector.extract_strided_slice %4 {offsets = [32, 0], sizes = [8, 128], strides = [1, 1]} : vector<64x128xf32> to vector<8x128xf32>
    %11 = vector.extract_strided_slice %4 {offsets = [40, 0], sizes = [8, 128], strides = [1, 1]} : vector<64x128xf32> to vector<8x128xf32>
    %12 = vector.extract_strided_slice %4 {offsets = [48, 0], sizes = [8, 128], strides = [1, 1]} : vector<64x128xf32> to vector<8x128xf32>
    %13 = vector.extract_strided_slice %4 {offsets = [56, 0], sizes = [8, 128], strides = [1, 1]} : vector<64x128xf32> to vector<8x128xf32>
    %14 = tpu.concatenate %6, %7, %8, %9, %10, %11, %12, %13 in 1 : vector<8x128xf32>, vector<8x128xf32>, vector<8x128xf32>, vector<8x128xf32>, vector<8x128xf32>, vector<8x128xf32>, vector<8x128xf32>, vector<8x128xf32> -> vector<8x1024xf32>
    %15 = vector.extract_strided_slice %5 {offsets = [0, 0], sizes = [8, 128], strides = [1, 1]} : vector<64x128xf32> to vector<8x128xf32>
    %16 = vector.extract_strided_slice %5 {offsets = [8, 0], sizes = [8, 128], strides = [1, 1]} : vector<64x128xf32> to vector<8x128xf32>
    %17 = vector.extract_strided_slice %5 {offsets = [16, 0], sizes = [8, 128], strides = [1, 1]} : vector<64x128xf32> to vector<8x128xf32>
    %18 = vector.extract_strided_slice %5 {offsets = [24, 0], sizes = [8, 128], strides = [1, 1]} : vector<64x128xf32> to vector<8x128xf32>
    %19 = vector.extract_strided_slice %5 {offsets = [32, 0], sizes = [8, 128], strides = [1, 1]} : vector<64x128xf32> to vector<8x128xf32>
    %20 = vector.extract_strided_slice %5 {offsets = [40, 0], sizes = [8, 128], strides = [1, 1]} : vector<64x128xf32> to vector<8x128xf32>
    %21 = vector.extract_strided_slice %5 {offsets = [48, 0], sizes = [8, 128], strides = [1, 1]} : vector<64x128xf32> to vector<8x128xf32>
    %22 = vector.extract_strided_slice %5 {offsets = [56, 0], sizes = [8, 128], strides = [1, 1]} : vector<64x128xf32> to vector<8x128xf32>
    %23 = tpu.concatenate %15, %16, %17, %18, %19, %20, %21, %22 in 1 : vector<8x128xf32>, vector<8x128xf32>, vector<8x128xf32>, vector<8x128xf32>, vector<8x128xf32>, vector<8x128xf32>, vector<8x128xf32>, vector<8x128xf32> -> vector<8x1024xf32>
    %24 = tpu.concatenate %14, %23 in 0 : vector<8x1024xf32>, vector<8x1024xf32> -> vector<16x1024xf32>
    %c0_4 = arith.constant 0 : index
    %c0_5 = arith.constant 0 : index
    %25 = vector.load %arg3[%c0_4, %c0_5] : memref<8x16xf32, #tpu.memory_space<vmem>>, vector<8x16xf32>
    %cst_6 = arith.constant dense<0.000000e+00> : vector<8x1024xf32>
    %26 = tpu.matmul %25, %24, %cst_6 {dimension_numbers = #tpu.dot_dimension_numbers<[1], [0], [0], [1], [0, 0, 1, 1], [], []>} : vector<8x16xf32>, vector<16x1024xf32>, vector<8x1024xf32> -> vector<8x1024xf32>
    %27 = vector.extract_strided_slice %26 {offsets = [0, 0], sizes = [8, 128], strides = [1, 1]} : vector<8x1024xf32> to vector<8x128xf32>
    %c0_7 = arith.constant 0 : index
    %c0_8 = arith.constant 0 : index
    %c0_9 = arith.constant 0 : index
    %28 = vector.load %arg4[%c0_7, %c0_8, %c0_9] : memref<8x8x128xf32, #tpu.memory_space<vmem>>, vector<1x8x128xf32>
    %29 = vector.shape_cast %28 : vector<1x8x128xf32> to vector<8x128xf32>
    %30 = vector.shape_cast %27 : vector<8x128xf32> to vector<1x8x128xf32>
    tpu.vector_store %arg4[%c0_7, %c0_8, %c0_9], %30 {strides = array<i32>} : memref<8x8x128xf32, #tpu.memory_space<vmem>>, vector<1x8x128xf32>,
    %31 = vector.extract_strided_slice %26 {offsets = [0, 128], sizes = [8, 128], strides = [1, 1]} : vector<8x1024xf32> to vector<8x128xf32>
    %c1 = arith.constant 1 : index
    %c0_10 = arith.constant 0 : index
    %c0_11 = arith.constant 0 : index
    %32 = vector.load %arg4[%c1, %c0_10, %c0_11] : memref<8x8x128xf32, #tpu.memory_space<vmem>>, vector<1x8x128xf32>
    %33 = vector.shape_cast %32 : vector<1x8x128xf32> to vector<8x128xf32>
    %34 = vector.shape_cast %31 : vector<8x128xf32> to vector<1x8x128xf32>
    tpu.vector_store %arg4[%c1, %c0_10, %c0_11], %34 {strides = array<i32>} : memref<8x8x128xf32, #tpu.memory_space<vmem>>, vector<1x8x128xf32>,
    %35 = vector.extract_strided_slice %26 {offsets = [0, 256], sizes = [8, 128], strides = [1, 1]} : vector<8x1024xf32> to vector<8x128xf32>
    %c2 = arith.constant 2 : index
    %c0_12 = arith.constant 0 : index
    %c0_13 = arith.constant 0 : index
    %36 = vector.load %arg4[%c2, %c0_12, %c0_13] : memref<8x8x128xf32, #tpu.memory_space<vmem>>, vector<1x8x128xf32>
    %37 = vector.shape_cast %36 : vector<1x8x128xf32> to vector<8x128xf32>
    %38 = vector.shape_cast %35 : vector<8x128xf32> to vector<1x8x128xf32>
    tpu.vector_store %arg4[%c2, %c0_12, %c0_13], %38 {strides = array<i32>} : memref<8x8x128xf32, #tpu.memory_space<vmem>>, vector<1x8x128xf32>,
    %39 = vector.extract_strided_slice %26 {offsets = [0, 384], sizes = [8, 128], strides = [1, 1]} : vector<8x1024xf32> to vector<8x128xf32>
    %c3 = arith.constant 3 : index
    %c0_14 = arith.constant 0 : index
    %c0_15 = arith.constant 0 : index
    %40 = vector.load %arg4[%c3, %c0_14, %c0_15] : memref<8x8x128xf32, #tpu.memory_space<vmem>>, vector<1x8x128xf32>
    %41 = vector.shape_cast %40 : vector<1x8x128xf32> to vector<8x128xf32>
    %42 = vector.shape_cast %39 : vector<8x128xf32> to vector<1x8x128xf32>
    tpu.vector_store %arg4[%c3, %c0_14, %c0_15], %42 {strides = array<i32>} : memref<8x8x128xf32, #tpu.memory_space<vmem>>, vector<1x8x128xf32>,
    %43 = vector.extract_strided_slice %26 {offsets = [0, 512], sizes = [8, 128], strides = [1, 1]} : vector<8x1024xf32> to vector<8x128xf32>
    %c4 = arith.constant 4 : index
    %c0_16 = arith.constant 0 : index
    %c0_17 = arith.constant 0 : index
    %44 = vector.load %arg4[%c4, %c0_16, %c0_17] : memref<8x8x128xf32, #tpu.memory_space<vmem>>, vector<1x8x128xf32>
    %45 = vector.shape_cast %44 : vector<1x8x128xf32> to vector<8x128xf32>
    %46 = vector.shape_cast %43 : vector<8x128xf32> to vector<1x8x128xf32>
    tpu.vector_store %arg4[%c4, %c0_16, %c0_17], %46 {strides = array<i32>} : memref<8x8x128xf32, #tpu.memory_space<vmem>>, vector<1x8x128xf32>,
    %47 = vector.extract_strided_slice %26 {offsets = [0, 640], sizes = [8, 128], strides = [1, 1]} : vector<8x1024xf32> to vector<8x128xf32>
    %c5 = arith.constant 5 : index
    %c0_18 = arith.constant 0 : index
    %c0_19 = arith.constant 0 : index
    %48 = vector.load %arg4[%c5, %c0_18, %c0_19] : memref<8x8x128xf32, #tpu.memory_space<vmem>>, vector<1x8x128xf32>
    %49 = vector.shape_cast %48 : vector<1x8x128xf32> to vector<8x128xf32>
    %50 = vector.shape_cast %47 : vector<8x128xf32> to vector<1x8x128xf32>
    tpu.vector_store %arg4[%c5, %c0_18, %c0_19], %50 {strides = array<i32>} : memref<8x8x128xf32, #tpu.memory_space<vmem>>, vector<1x8x128xf32>,
    %51 = vector.extract_strided_slice %26 {offsets = [0, 768], sizes = [8, 128], strides = [1, 1]} : vector<8x1024xf32> to vector<8x128xf32>
    %c6 = arith.constant 6 : index
    %c0_20 = arith.constant 0 : index
    %c0_21 = arith.constant 0 : index
    %52 = vector.load %arg4[%c6, %c0_20, %c0_21] : memref<8x8x128xf32, #tpu.memory_space<vmem>>, vector<1x8x128xf32>
    %53 = vector.shape_cast %52 : vector<1x8x128xf32> to vector<8x128xf32>
    %54 = vector.shape_cast %51 : vector<8x128xf32> to vector<1x8x128xf32>
    tpu.vector_store %arg4[%c6, %c0_20, %c0_21], %54 {strides = array<i32>} : memref<8x8x128xf32, #tpu.memory_space<vmem>>, vector<1x8x128xf32>,
    %55 = vector.extract_strided_slice %26 {offsets = [0, 896], sizes = [8, 128], strides = [1, 1]} : vector<8x1024xf32> to vector<8x128xf32>
    %c7 = arith.constant 7 : index
    %c0_22 = arith.constant 0 : index
    %c0_23 = arith.constant 0 : index
    %56 = vector.load %arg4[%c7, %c0_22, %c0_23] : memref<8x8x128xf32, #tpu.memory_space<vmem>>, vector<1x8x128xf32>
    %57 = vector.shape_cast %56 : vector<1x8x128xf32> to vector<8x128xf32>
    %58 = vector.shape_cast %55 : vector<8x128xf32> to vector<1x8x128xf32>
    tpu.vector_store %arg4[%c7, %c0_22, %c0_23], %58 {strides = array<i32>} : memref<8x8x128xf32, #tpu.memory_space<vmem>>, vector<1x8x128xf32>,
    return
  }
  func.func @transform_0(%arg0: i32) -> (i32, i32, i32) {
    %c0_i32 = arith.constant 0 : i32
    %c0_i32_0 = arith.constant 0 : i32
    %c0_i32_1 = arith.constant 0 : i32
    return %arg0, %c0_i32, %c0_i32_0 : i32, i32, i32
  }
  func.func @transform_1(%arg0: i32) -> (i32, i32) {
    %c0_i32 = arith.constant 0 : i32
    %c0_i32_0 = arith.constant 0 : i32
    %c0_i32_1 = arith.constant 0 : i32
    return %c0_i32, %c0_i32_0 : i32, i32
  }
  func.func @transform_2(%arg0: i32) -> (i32, i32) {
    %c0_i32 = arith.constant 0 : i32
    %c0_i32_0 = arith.constant 0 : i32
    %c0_i32_1 = arith.constant 0 : i32
    return %c0_i32, %c0_i32_0 : i32, i32
  }
  func.func @transform_3(%arg0: i32) -> (i32, i32, i32) {
    %c0_i32 = arith.constant 0 : i32
    %c0_i32_0 = arith.constant 0 : i32
    %c0_i32_1 = arith.constant 0 : i32
    return %arg0, %c0_i32, %c0_i32_0 : i32, i32, i32
  }
}

</mosaic_0001>

<llo_original>
// kernel: _fourier_pallas.1
$region0: #{_fourier_pallas.1}
  #allocation0 [shape = 'u32[]', space=smem, size = 0x4, offset = 0x4, fixed_abs, tag = 'smem constant byte address 0x4 - core index']
  #allocation1 [shape = 'u32[144,128]{1,0:T(1,128)}', space=vmem, size = 0x12000, scoped, tag = 'internal scratch']
  %s0 = inlined_call_operand.hbm [shape: f32[8,8,128], index: 0, kind: input, shape index: {}]
  %s1 = inlined_call_operand.hbm [shape: f32[128,256], index: 1, kind: input, shape index: {}]
  %s2 = inlined_call_operand.hbm [shape: f32[8,16], index: 2, kind: input, shape index: {}]
  %s3 = inlined_call_operand.hbm [shape: f32[8,8,128], index: 3, kind: output, shape index: {}]
  %s4 = sld [smem:[#allocation0]]
  $region34: #{_fourier_pallas.1} parent=0
    _
  %s6 = ssub.s32 1, %s4
  %s7 = scalar_select 0, %s6, %s4
  $region1: #{_fourier_pallas.1} parent=0
    #allocation2 [shape = 'u8[32768]{0}', space=vmem, size = 0x8000, scoped, tag = 'input window, operand 0, single buffered']
    #allocation3 [shape = 's32[1]{0}', space=sflag, size = 0x4, scoped, tag = 'scoped memory for _fourier_pallas.1']
    #allocation4 [shape = 's32[1]{0}', space=sflag, size = 0x4, scoped, tag = 'scoped memory for _fourier_pallas.1']
    #allocation5 [shape = 'u8[131072]{0}', space=vmem, size = 0x20000, scoped, tag = 'input window, operand 1, single buffered']
    #allocation6 [shape = 's32[1]{0}', space=sflag, size = 0x4, scoped, tag = 'scoped memory for _fourier_pallas.1']
    #allocation7 [shape = 'u8[4096]{0}', space=vmem, size = 0x1000, scoped, tag = 'input window, operand 2, single buffered']
    #allocation8 [shape = 'u8[32768]{0}', space=vmem, size = 0x8000, scoped, tag = 'output window, operand 0, single buffered']
    %8 = vsyncpa [#allocation3], 0
    %9 = vsyncpa [#allocation6], 0
    %10 = vsyncpa [#allocation4], 0
    // Predicated region
    $region2: #{_fourier_pallas.1} parent=1 // pred_check
      _
    $region3: #{_fourier_pallas.1} parent=1 // pred_check_branch
      %12 = sbr.rel (0) target = $region5
    $region4: #{_fourier_pallas.1} parent=1 // pred_region
      %s14 = ssub.s32 1024, 1024
      %15 = vsyncadd [#allocation3], %s14
      %s16 = sshll.u32 [#allocation2], 4
      %s17 = int_to_ptr.vmem [resolvable:$true] %s16
      %22 = dma.hbm_to_vmem [thread:$0]  %s0, 1024, %s17, [#allocation3], 128, 128, 8
    $region5: #{_fourier_pallas.1} parent=1 // pred_fallthru
      _
    // Predicated region
    $region6: #{_fourier_pallas.1} parent=1 // pred_check
      _
    $region7: #{_fourier_pallas.1} parent=1 // pred_check_branch
      %24 = sbr.rel (0) target = $region9
    $region8: #{_fourier_pallas.1} parent=1 // pred_region
      %s26 = ssub.s32 4096, 4096
      %27 = vsyncadd [#allocation6], %s26
      %s28 = sshll.u32 [#allocation5], 4
      %s29 = int_to_ptr.vmem [resolvable:$true] %s28
      %34 = dma.hbm_to_vmem [thread:$0]  %s1, 4096, %s29, [#allocation6], 256, 256, 16
    $region9: #{_fourier_pallas.1} parent=1 // pred_fallthru
      _
    // Predicated region
    $region10: #{_fourier_pallas.1} parent=1 // pred_check
      _
    $region11: #{_fourier_pallas.1} parent=1 // pred_check_branch
      %36 = sbr.rel (0) target = $region13
    $region12: #{_fourier_pallas.1} parent=1 // pred_region
      %s38 = ssub.s32 128, 128
      %39 = vsyncadd [#allocation6], %s38
      %s41 = sshll.u32 [#allocation7], 4
      %s42 = int_to_ptr.vmem [resolvable:$true] %s41
      %44 = dma.hbm_to_vmem [thread:$0]  %s2, 128, %s42, [#allocation6]
    $region13: #{_fourier_pallas.1} parent=1 // pred_fallthru
      _
    // Predicated region
    $region14: #{_fourier_pallas.1} parent=1 // pred_check
      _
    $region15: #{_fourier_pallas.1} parent=1 // pred_check_branch
      %46 = sbr.rel (0) target = $region17
    $region16: #{_fourier_pallas.1} parent=1 // pred_region
      %47 = dma.done [#allocation3], 1024
    $region17: #{_fourier_pallas.1} parent=1 // pred_fallthru
      _
    // Predicated region
    $region18: #{_fourier_pallas.1} parent=1 // pred_check
      _
    $region19: #{_fourier_pallas.1} parent=1 // pred_check_branch
      %49 = sbr.rel (0) target = $region21
    $region20: #{_fourier_pallas.1} parent=1 // pred_region
      %50 = dma.done [#allocation6], 4096
    $region21: #{_fourier_pallas.1} parent=1 // pred_fallthru
      _
    // Predicated region
    $region22: #{_fourier_pallas.1} parent=1 // pred_check
      _
    $region23: #{_fourier_pallas.1} parent=1 // pred_check_branch
      %52 = sbr.rel (0) target = $region25
    $region24: #{_fourier_pallas.1} parent=1 // pred_region
      %53 = dma.done [#allocation6], 128
    $region25: #{_fourier_pallas.1} parent=1 // pred_fallthru
      _
    %v54 = vld [vmem:[#allocation2] sm:$0xff]
    %v55 = vld [vmem:[#allocation2 + $0x8] sm:$0xff]
    %v56 = vld [vmem:[#allocation2 + $0x10] sm:$0xff]
    %v57 = vld [vmem:[#allocation2 + $0x18] sm:$0xff]
    %v58 = vld [vmem:[#allocation2 + $0x20] sm:$0xff]
    %v59 = vld [vmem:[#allocation2 + $0x28] sm:$0xff]
    %v60 = vld [vmem:[#allocation2 + $0x30] sm:$0xff]
    %v61 = vld [vmem:[#allocation2 + $0x38] sm:$0xff]
    %v62 = vld [vmem:[#allocation5] sm:$0xff]
    %v63 = vld [vmem:[#allocation5 + $0x8] sm:$0xff]
    %v64 = vld [vmem:[#allocation5 + $0x10] sm:$0xff]
    %v65 = vld [vmem:[#allocation5 + $0x18] sm:$0xff]
    %v66 = vld [vmem:[#allocation5 + $0x20] sm:$0xff]
    %v67 = vld [vmem:[#allocation5 + $0x28] sm:$0xff]
    %v68 = vld [vmem:[#allocation5 + $0x30] sm:$0xff]
    %v69 = vld [vmem:[#allocation5 + $0x38] sm:$0xff]
    %v70 = vld [vmem:[#allocation5 + $0x40] sm:$0xff]
    %v71 = vld [vmem:[#allocation5 + $0x48] sm:$0xff]
    %v72 = vld [vmem:[#allocation5 + $0x50] sm:$0xff]
    %v73 = vld [vmem:[#allocation5 + $0x58] sm:$0xff]
    %v74 = vld [vmem:[#allocation5 + $0x60] sm:$0xff]
    %v75 = vld [vmem:[#allocation5 + $0x68] sm:$0xff]
    %v76 = vld [vmem:[#allocation5 + $0x70] sm:$0xff]
    %v77 = vld [vmem:[#allocation5 + $0x78] sm:$0xff]
    %v78 = vld [vmem:[#allocation5 + $0x80] sm:$0xff]
    %v79 = vld [vmem:[#allocation5 + $0x88] sm:$0xff]
    %v80 = vld [vmem:[#allocation5 + $0x90] sm:$0xff]
    %v81 = vld [vmem:[#allocation5 + $0x98] sm:$0xff]
    %v82 = vld [vmem:[#allocation5 + $0xa0] sm:$0xff]
    %v83 = vld [vmem:[#allocation5 + $0xa8] sm:$0xff]
    %v84 = vld [vmem:[#allocation5 + $0xb0] sm:$0xff]
    %v85 = vld [vmem:[#allocation5 + $0xb8] sm:$0xff]
    %v86 = vld [vmem:[#allocation5 + $0xc0] sm:$0xff]
    %v87 = vld [vmem:[#allocation5 + $0xc8] sm:$0xff]
    %v88 = vld [vmem:[#allocation5 + $0xd0] sm:$0xff]
    %v89 = vld [vmem:[#allocation5 + $0xd8] sm:$0xff]
    %v90 = vld [vmem:[#allocation5 + $0xe0] sm:$0xff]
    %v91 = vld [vmem:[#allocation5 + $0xe8] sm:$0xff]
    %v92 = vld [vmem:[#allocation5 + $0xf0] sm:$0xff]
    %v93 = vld [vmem:[#allocation5 + $0xf8] sm:$0xff]
    %94 = vmatprep.subr.mxu0 %v93
    %95 = vmatpush1.msra.mxu0 %v92
    %96 = vmatprep.subr.mxu0 %v91
    %97 = vmatpush1.msra.mxu0 %v90
    %98 = vmatprep.subr.mxu0 %v89
    %99 = vmatpush1.msra.mxu0 %v88
    %100 = vmatprep.subr.mxu0 %v87
    %101 = vmatpush1.msra.mxu0 %v86
    %102 = vmatprep.subr.mxu0 %v85
    %103 = vmatpush1.msra.mxu0 %v84
    %104 = vmatprep.subr.mxu0 %v83
    %105 = vmatpush1.msra.mxu0 %v82
    %106 = vmatprep.subr.mxu0 %v81
    %107 = vmatpush1.msra.mxu0 %v80
    %108 = vmatprep.subr.mxu0 %v79
    %109 = vmatpush1.msra.mxu0 %v78
    %110 = vmatprep.subr.mxu0 %v77
    %111 = vmatpush1.msra.mxu0 %v76
    %112 = vmatprep.subr.mxu0 %v75
    %113 = vmatpush1.msra.mxu0 %v74
    %114 = vmatprep.subr.mxu0 %v73
    %115 = vmatpush1.msra.mxu0 %v72
    %116 = vmatprep.subr.mxu0 %v71
    %117 = vmatpush1.msra.mxu0 %v70
    %118 = vmatprep.subr.mxu0 %v69
    %119 = vmatpush1.msra.mxu0 %v68
    %120 = vmatprep.subr.mxu0 %v67
    %121 = vmatpush1.msra.mxu0 %v66
    %122 = vmatprep.subr.mxu0 %v65
    %123 = vmatpush1.msra.mxu0 %v64
    %124 = vmatprep.subr.mxu0 %v63
    %125 = vmatpush1.msra.mxu0 %v62
    %126 = vmatprep.subr.mxu0 0.0
    %127 = vmatpush2.msra.mxu0 0.0
    %128 = vmatprep.subr.mxu0 0.0
    %129 = vmatpush2.msra.mxu0 0.0
    %130 = vmatprep.subr.mxu0 0.0
    %131 = vmatpush2.msra.mxu0 0.0
    %132 = vmatprep.subr.mxu0 0.0
    %133 = vmatpush2.msra.mxu0 0.0
    %134 = vmatprep.subr.mxu0 0.0
    %135 = vmatpush2.msra.mxu0 0.0
    %136 = vmatprep.subr.mxu0 0.0
    %137 = vmatpush2.msra.mxu0 0.0
    %138 = vmatprep.subr.mxu0 0.0
    %139 = vmatpush2.msra.mxu0 0.0
    %140 = vmatprep.subr.mxu0 0.0
    %141 = vmatpush2.msra.mxu0 0.0
    %142 = vmatprep.subr.mxu0 0.0
    %143 = vmatpush2.msra.mxu0 0.0
    %144 = vmatprep.subr.mxu0 0.0
    %145 = vmatpush2.msra.mxu0 0.0
    %146 = vmatprep.subr.mxu0 0.0
    %147 = vmatpush2.msra.mxu0 0.0
    %148 = vmatprep.subr.mxu0 0.0
    %149 = vmatpush2.msra.mxu0 0.0
    %150 = vmatprep.subr.mxu0 0.0
    %151 = vmatpush2.msra.mxu0 0.0
    %152 = vmatprep.subr.mxu0 0.0
    %153 = vmatpush2.msra.mxu0 0.0
    %154 = vmatprep.subr.mxu0 0.0
    %155 = vmatpush2.msra.mxu0 0.0
    %156 = vmatprep.subr.mxu0 0.0
    %157 = vmatpush2.msra.mxu0 0.0
    %158 = vmatprep.mubr.f32.mxu0 0.0
    %159 = vmatmul.mubr.f32.gmra.mxu0 %v54
    %v160 = vpop.f32.mrf.mxu0
    %v161 = vadd.f32 0.0, %v160
    %v162 = vpop.f32.mrf.mxu0
    %v163 = vadd.f32 0.0, %v162
    %164 = vmatprep.mubr.f32.mxu0 0.0
    %165 = vmatmul.mubr.f32.gmra.mxu0 %v55
    %v166 = vpop.f32.mrf.mxu0
    %v167 = vadd.f32 0.0, %v166
    %v168 = vpop.f32.mrf.mxu0
    %v169 = vadd.f32 0.0, %v168
    %170 = vmatprep.mubr.f32.mxu0 0.0
    %171 = vmatmul.mubr.f32.gmra.mxu0 %v56
    %v172 = vpop.f32.mrf.mxu0
    %v173 = vadd.f32 0.0, %v172
    %v174 = vpop.f32.mrf.mxu0
    %v175 = vadd.f32 0.0, %v174
    %176 = vmatprep.mubr.f32.mxu0 0.0
    %177 = vmatmul.mubr.f32.gmra.mxu0 %v57
    %v178 = vpop.f32.mrf.mxu0
    %v179 = vadd.f32 0.0, %v178
    %v180 = vpop.f32.mrf.mxu0
    %v181 = vadd.f32 0.0, %v180
    %182 = vmatprep.mubr.f32.mxu0 0.0
    %183 = vmatmul.mubr.f32.gmra.mxu0 %v58
    %v184 = vpop.f32.mrf.mxu0
    %v185 = vadd.f32 0.0, %v184
    %v186 = vpop.f32.mrf.mxu0
    %v187 = vadd.f32 0.0, %v186
    %188 = vmatprep.mubr.f32.mxu0 0.0
    %189 = vmatmul.mubr.f32.gmra.mxu0 %v59
    %v190 = vpop.f32.mrf.mxu0
    %v191 = vadd.f32 0.0, %v190
    %v192 = vpop.f32.mrf.mxu0
    %v193 = vadd.f32 0.0, %v192
    %194 = vmatprep.mubr.f32.mxu0 0.0
    %195 = vmatmul.mubr.f32.gmra.mxu0 %v60
    %v196 = vpop.f32.mrf.mxu0
    %v197 = vadd.f32 0.0, %v196
    %v198 = vpop.f32.mrf.mxu0
    %v199 = vadd.f32 0.0, %v198
    %200 = vmatprep.mubr.f32.mxu0 0.0
    %201 = vmatmul.mubr.f32.gmra.mxu0 %v61
    %v202 = vpop.f32.mrf.mxu0
    %v203 = vadd.f32 0.0, %v202
    %v204 = vpop.f32.mrf.mxu0
    %v205 = vadd.f32 0.0, %v204
    %206 = vdwg.mxu0
    %v207 = vld [vmem:[#allocation7] sm:$0xff]
    %vm208 = vcmask 130048
    %v210 = vsel %vm208, %v207, 0
    %212 = vmatprep.subr.mxu0 0.0
    %213 = vmatpush1.msra.mxu0 0.0
    %214 = vmatprep.subr.mxu0 0.0
    %215 = vmatpush1.msra.mxu0 0.0
    %216 = vmatprep.subr.mxu0 0.0
    %217 = vmatpush1.msra.mxu0 0.0
    %218 = vmatprep.subr.mxu0 0.0
    %219 = vmatpush1.msra.mxu0 0.0
    %220 = vmatprep.subr.mxu0 0.0
    %221 = vmatpush1.msra.mxu0 0.0
    %222 = vmatprep.subr.mxu0 0.0
    %223 = vmatpush1.msra.mxu0 0.0
    %224 = vmatprep.subr.mxu0 0.0
    %225 = vmatpush1.msra.mxu0 0.0
    %226 = vmatprep.subr.mxu0 0.0
    %227 = vmatpush1.msra.mxu0 0.0
    %228 = vmatprep.subr.mxu0 0.0
    %229 = vmatpush1.msra.mxu0 0.0
    %230 = vmatprep.subr.mxu0 0.0
    %231 = vmatpush1.msra.mxu0 0.0
    %232 = vmatprep.subr.mxu0 0.0
    %233 = vmatpush1.msra.mxu0 0.0
    %234 = vmatprep.subr.mxu0 0.0
    %235 = vmatpush1.msra.mxu0 0.0
    %236 = vmatprep.subr.mxu0 0.0
    %237 = vmatpush1.msra.mxu0 0.0
    %238 = vmatprep.subr.mxu0 0.0
    %239 = vmatpush1.msra.mxu0 0.0
    %240 = vmatprep.subr.mxu0 %v169
    %241 = vmatpush1.msra.mxu0 %v163
    %242 = vmatprep.subr.mxu0 %v167
    %243 = vmatpush1.msra.mxu0 %v161
    %244 = vmatprep.subr.mxu0 0.0
    %245 = vmatpush2.msra.mxu0 0.0
    %246 = vmatprep.subr.mxu0 0.0
    %247 = vmatpush2.msra.mxu0 0.0
    %248 = vmatprep.subr.mxu0 0.0
    %249 = vmatpush2.msra.mxu0 0.0
    %250 = vmatprep.subr.mxu0 0.0
    %251 = vmatpush2.msra.mxu0 0.0
    %252 = vmatprep.subr.mxu0 0.0
    %253 = vmatpush2.msra.mxu0 0.0
    %254 = vmatprep.subr.mxu0 0.0
    %255 = vmatpush2.msra.mxu0 0.0
    %256 = vmatprep.subr.mxu0 0.0
    %257 = vmatpush2.msra.mxu0 0.0
    %258 = vmatprep.subr.mxu0 0.0
    %259 = vmatpush2.msra.mxu0 0.0
    %260 = vmatprep.subr.mxu0 0.0
    %261 = vmatpush2.msra.mxu0 0.0
    %262 = vmatprep.subr.mxu0 0.0
    %263 = vmatpush2.msra.mxu0 0.0
    %264 = vmatprep.subr.mxu0 0.0
    %265 = vmatpush2.msra.mxu0 0.0
    %266 = vmatprep.subr.mxu0 0.0
    %267 = vmatpush2.msra.mxu0 0.0
    %268 = vmatprep.subr.mxu0 0.0
    %269 = vmatpush2.msra.mxu0 0.0
    %270 = vmatprep.subr.mxu0 0.0
    %271 = vmatpush2.msra.mxu0 0.0
    %272 = vmatprep.subr.mxu0 0.0
    %273 = vmatpush2.msra.mxu0 0.0
    %274 = vmatprep.subr.mxu0 0.0
    %275 = vmatpush2.msra.mxu0 0.0
    %276 = vmatprep.mubr.f32.mxu0 0.0
    %277 = vmatmul.mubr.f32.gmra.mxu0 %v210
    %v278 = vpop.f32.mrf.mxu0
    %v279 = vadd.f32 0.0, %v278
    %v280 = vpop.f32.mrf.mxu0
    %v281 = vadd.f32 0.0, %v280
    %282 = vdwg.mxu0
    %283 = vmatprep.subr.mxu0 0.0
    %284 = vmatpush1.msra.mxu0 0.0
    %285 = vmatprep.subr.mxu0 0.0
    %286 = vmatpush1.msra.mxu0 0.0
    %287 = vmatprep.subr.mxu0 0.0
    %288 = vmatpush1.msra.mxu0 0.0
    %289 = vmatprep.subr.mxu0 0.0
    %290 = vmatpush1.msra.mxu0 0.0
    %291 = vmatprep.subr.mxu0 0.0
    %292 = vmatpush1.msra.mxu0 0.0
    %293 = vmatprep.subr.mxu0 0.0
    %294 = vmatpush1.msra.mxu0 0.0
    %295 = vmatprep.subr.mxu0 0.0
    %296 = vmatpush1.msra.mxu0 0.0
    %297 = vmatprep.subr.mxu0 0.0
    %298 = vmatpush1.msra.mxu0 0.0
    %299 = vmatprep.subr.mxu0 0.0
    %300 = vmatpush1.msra.mxu0 0.0
    %301 = vmatprep.subr.mxu0 0.0
    %302 = vmatpush1.msra.mxu0 0.0
    %303 = vmatprep.subr.mxu0 0.0
    %304 = vmatpush1.msra.mxu0 0.0
    %305 = vmatprep.subr.mxu0 0.0
    %306 = vmatpush1.msra.mxu0 0.0
    %307 = vmatprep.subr.mxu0 0.0
    %308 = vmatpush1.msra.mxu0 0.0
    %309 = vmatprep.subr.mxu0 0.0
    %310 = vmatpush1.msra.mxu0 0.0
    %311 = vmatprep.subr.mxu0 %v181
    %312 = vmatpush1.msra.mxu0 %v175
    %313 = vmatprep.subr.mxu0 %v179
    %314 = vmatpush1.msra.mxu0 %v173
    %315 = vmatprep.subr.mxu0 0.0
    %316 = vmatpush2.msra.mxu0 0.0
    %317 = vmatprep.subr.mxu0 0.0
    %318 = vmatpush2.msra.mxu0 0.0
    %319 = vmatprep.subr.mxu0 0.0
    %320 = vmatpush2.msra.mxu0 0.0
    %321 = vmatprep.subr.mxu0 0.0
    %322 = vmatpush2.msra.mxu0 0.0
    %323 = vmatprep.subr.mxu0 0.0
    %324 = vmatpush2.msra.mxu0 0.0
    %325 = vmatprep.subr.mxu0 0.0
    %326 = vmatpush2.msra.mxu0 0.0
    %327 = vmatprep.subr.mxu0 0.0
    %328 = vmatpush2.msra.mxu0 0.0
    %329 = vmatprep.subr.mxu0 0.0
    %330 = vmatpush2.msra.mxu0 0.0
    %331 = vmatprep.subr.mxu0 0.0
    %332 = vmatpush2.msra.mxu0 0.0
    %333 = vmatprep.subr.mxu0 0.0
    %334 = vmatpush2.msra.mxu0 0.0
    %335 = vmatprep.subr.mxu0 0.0
    %336 = vmatpush2.msra.mxu0 0.0
    %337 = vmatprep.subr.mxu0 0.0
    %338 = vmatpush2.msra.mxu0 0.0
    %339 = vmatprep.subr.mxu0 0.0
    %340 = vmatpush2.msra.mxu0 0.0
    %341 = vmatprep.subr.mxu0 0.0
    %342 = vmatpush2.msra.mxu0 0.0
    %343 = vmatprep.subr.mxu0 0.0
    %344 = vmatpush2.msra.mxu0 0.0
    %345 = vmatprep.subr.mxu0 0.0
    %346 = vmatpush2.msra.mxu0 0.0
    %347 = vmatprep.mubr.f32.mxu0 0.0
    %348 = vmatmul.mubr.f32.gmra.mxu0 %v210
    %v349 = vpop.f32.mrf.mxu0
    %v350 = vadd.f32 0.0, %v349
    %v351 = vpop.f32.mrf.mxu0
    %v352 = vadd.f32 0.0, %v351
    %353 = vdwg.mxu0
    %354 = vmatprep.subr.mxu0 0.0
    %355 = vmatpush1.msra.mxu0 0.0
    %356 = vmatprep.subr.mxu0 0.0
    %357 = vmatpush1.msra.mxu0 0.0
    %358 = vmatprep.subr.mxu0 0.0
    %359 = vmatpush1.msra.mxu0 0.0
    %360 = vmatprep.subr.mxu0 0.0
    %361 = vmatpush1.msra.mxu0 0.0
    %362 = vmatprep.subr.mxu0 0.0
    %363 = vmatpush1.msra.mxu0 0.0
    %364 = vmatprep.subr.mxu0 0.0
    %365 = vmatpush1.msra.mxu0 0.0
    %366 = vmatprep.subr.mxu0 0.0
    %367 = vmatpush1.msra.mxu0 0.0
    %368 = vmatprep.subr.mxu0 0.0
    %369 = vmatpush1.msra.mxu0 0.0
    %370 = vmatprep.subr.mxu0 0.0
    %371 = vmatpush1.msra.mxu0 0.0
    %372 = vmatprep.subr.mxu0 0.0
    %373 = vmatpush1.msra.mxu0 0.0
    %374 = vmatprep.subr.mxu0 0.0
    %375 = vmatpush1.msra.mxu0 0.0
    %376 = vmatprep.subr.mxu0 0.0
    %377 = vmatpush1.msra.mxu0 0.0
    %378 = vmatprep.subr.mxu0 0.0
    %379 = vmatpush1.msra.mxu0 0.0
    %380 = vmatprep.subr.mxu0 0.0
    %381 = vmatpush1.msra.mxu0 0.0
    %382 = vmatprep.subr.mxu0 %v193
    %383 = vmatpush1.msra.mxu0 %v187
    %384 = vmatprep.subr.mxu0 %v191
    %385 = vmatpush1.msra.mxu0 %v185
    %386 = vmatprep.subr.mxu0 0.0
    %387 = vmatpush2.msra.mxu0 0.0
    %388 = vmatprep.subr.mxu0 0.0
    %389 = vmatpush2.msra.mxu0 0.0
    %390 = vmatprep.subr.mxu0 0.0
    %391 = vmatpush2.msra.mxu0 0.0
    %392 = vmatprep.subr.mxu0 0.0
    %393 = vmatpush2.msra.mxu0 0.0
    %394 = vmatprep.subr.mxu0 0.0
    %395 = vmatpush2.msra.mxu0 0.0
    %396 = vmatprep.subr.mxu0 0.0
    %397 = vmatpush2.msra.mxu0 0.0
    %398 = vmatprep.subr.mxu0 0.0
    %399 = vmatpush2.msra.mxu0 0.0
    %400 = vmatprep.subr.mxu0 0.0
    %401 = vmatpush2.msra.mxu0 0.0
    %402 = vmatprep.subr.mxu0 0.0
    %403 = vmatpush2.msra.mxu0 0.0
    %404 = vmatprep.subr.mxu0 0.0
    %405 = vmatpush2.msra.mxu0 0.0
    %406 = vmatprep.subr.mxu0 0.0
    %407 = vmatpush2.msra.mxu0 0.0
    %408 = vmatprep.subr.mxu0 0.0
    %409 = vmatpush2.msra.mxu0 0.0
    %410 = vmatprep.subr.mxu0 0.0
    %411 = vmatpush2.msra.mxu0 0.0
    %412 = vmatprep.subr.mxu0 0.0
    %413 = vmatpush2.msra.mxu0 0.0
    %414 = vmatprep.subr.mxu0 0.0
    %415 = vmatpush2.msra.mxu0 0.0
    %416 = vmatprep.subr.mxu0 0.0
    %417 = vmatpush2.msra.mxu0 0.0
    %418 = vmatprep.mubr.f32.mxu0 0.0
    %419 = vmatmul.mubr.f32.gmra.mxu0 %v210
    %v420 = vpop.f32.mrf.mxu0
    %v421 = vadd.f32 0.0, %v420
    %v422 = vpop.f32.mrf.mxu0
    %v423 = vadd.f32 0.0, %v422
    %424 = vdwg.mxu0
    %425 = vmatprep.subr.mxu0 0.0
    %426 = vmatpush1.msra.mxu0 0.0
    %427 = vmatprep.subr.mxu0 0.0
    %428 = vmatpush1.msra.mxu0 0.0
    %429 = vmatprep.subr.mxu0 0.0
    %430 = vmatpush1.msra.mxu0 0.0
    %431 = vmatprep.subr.mxu0 0.0
    %432 = vmatpush1.msra.mxu0 0.0
    %433 = vmatprep.subr.mxu0 0.0
    %434 = vmatpush1.msra.mxu0 0.0
    %435 = vmatprep.subr.mxu0 0.0
    %436 = vmatpush1.msra.mxu0 0.0
    %437 = vmatprep.subr.mxu0 0.0
    %438 = vmatpush1.msra.mxu0 0.0
    %439 = vmatprep.subr.mxu0 0.0
    %440 = vmatpush1.msra.mxu0 0.0
    %441 = vmatprep.subr.mxu0 0.0
    %442 = vmatpush1.msra.mxu0 0.0
    %443 = vmatprep.subr.mxu0 0.0
    %444 = vmatpush1.msra.mxu0 0.0
    %445 = vmatprep.subr.mxu0 0.0
    %446 = vmatpush1.msra.mxu0 0.0
    %447 = vmatprep.subr.mxu0 0.0
    %448 = vmatpush1.msra.mxu0 0.0
    %449 = vmatprep.subr.mxu0 0.0
    %450 = vmatpush1.msra.mxu0 0.0
    %451 = vmatprep.subr.mxu0 0.0
    %452 = vmatpush1.msra.mxu0 0.0
    %453 = vmatprep.subr.mxu0 %v205
    %454 = vmatpush1.msra.mxu0 %v199
    %455 = vmatprep.subr.mxu0 %v203
    %456 = vmatpush1.msra.mxu0 %v197
    %457 = vmatprep.subr.mxu0 0.0
    %458 = vmatpush2.msra.mxu0 0.0
    %459 = vmatprep.subr.mxu0 0.0
    %460 = vmatpush2.msra.mxu0 0.0
    %461 = vmatprep.subr.mxu0 0.0
    %462 = vmatpush2.msra.mxu0 0.0
    %463 = vmatprep.subr.mxu0 0.0
    %464 = vmatpush2.msra.mxu0 0.0
    %465 = vmatprep.subr.mxu0 0.0
    %466 = vmatpush2.msra.mxu0 0.0
    %467 = vmatprep.subr.mxu0 0.0
    %468 = vmatpush2.msra.mxu0 0.0
    %469 = vmatprep.subr.mxu0 0.0
    %470 = vmatpush2.msra.mxu0 0.0
    %471 = vmatprep.subr.mxu0 0.0
    %472 = vmatpush2.msra.mxu0 0.0
    %473 = vmatprep.subr.mxu0 0.0
    %474 = vmatpush2.msra.mxu0 0.0
    %475 = vmatprep.subr.mxu0 0.0
    %476 = vmatpush2.msra.mxu0 0.0
    %477 = vmatprep.subr.mxu0 0.0
    %478 = vmatpush2.msra.mxu0 0.0
    %479 = vmatprep.subr.mxu0 0.0
    %480 = vmatpush2.msra.mxu0 0.0
    %481 = vmatprep.subr.mxu0 0.0
    %482 = vmatpush2.msra.mxu0 0.0
    %483 = vmatprep.subr.mxu0 0.0
    %484 = vmatpush2.msra.mxu0 0.0
    %485 = vmatprep.subr.mxu0 0.0
    %486 = vmatpush2.msra.mxu0 0.0
    %487 = vmatprep.subr.mxu0 0.0
    %488 = vmatpush2.msra.mxu0 0.0
    %489 = vmatprep.mubr.f32.mxu0 0.0
    %490 = vmatmul.mubr.f32.gmra.mxu0 %v210
    %v491 = vpop.f32.mrf.mxu0
    %v492 = vadd.f32 0.0, %v491
    %v493 = vpop.f32.mrf.mxu0
    %v494 = vadd.f32 0.0, %v493
    %495 = vdwg.mxu0
    %496 = vst [vmem:[#allocation8] sm:$0xff] %v279
    %s497 = scalar_lea.vmem [#allocation8], 8
    %498 = vst [vmem:[%s497] sm:$0xff] %v281
    %s499 = scalar_lea.vmem [#allocation8], 16
    %500 = vst [vmem:[%s499] sm:$0xff] %v350
    %s501 = scalar_lea.vmem [#allocation8], 24
    %502 = vst [vmem:[%s501] sm:$0xff] %v352
    %s503 = scalar_lea.vmem [#allocation8], 32
    %504 = vst [vmem:[%s503] sm:$0xff] %v421
    %s505 = scalar_lea.vmem [#allocation8], 40
    %506 = vst [vmem:[%s505] sm:$0xff] %v423
    %s507 = scalar_lea.vmem [#allocation8], 48
    %508 = vst [vmem:[%s507] sm:$0xff] %v492
    %s509 = scalar_lea.vmem [#allocation8], 56
    %510 = vst [vmem:[%s509] sm:$0xff] %v494
    // Predicated region
    $region26: #{_fourier_pallas.1} parent=1 // pred_check
      _
    $region27: #{_fourier_pallas.1} parent=1 // pred_check_branch
      %512 = sbr.rel (0) target = $region29
    $region28: #{_fourier_pallas.1} parent=1 // pred_region
      %s514 = ssub.s32 1024, 1024
      %515 = vsyncadd [#allocation4], %s514
      %s516 = sshll.u32 [#allocation8], 4
      %s517 = int_to_ptr.vmem [resolvable:$true] %s516
      %522 = dma.vmem_to_hbm [thread:$0]  %s517, 1024, %s3, [#allocation4], 128, 128, 8
    $region29: #{_fourier_pallas.1} parent=1 // pred_fallthru
      _
    // Predicated region
    $region30: #{_fourier_pallas.1} parent=1 // pred_check
      _
    $region31: #{_fourier_pallas.1} parent=1 // pred_check_branch
      %524 = sbr.rel (0) target = $region33
    $region32: #{_fourier_pallas.1} parent=1 // pred_region
      %525 = dma.done [#allocation4], 1024
    $region33: #{_fourier_pallas.1} parent=1 // pred_fallthru
      _
    %526 = vsyncpa [#allocation3], 1
    %527 = vsyncpa [#allocation6], 1
    %528 = vsyncpa [#allocation4], 1

</llo_original>
